<compile_context>
chip_gen: v7x
topology: tpu7x:2x2x1
jax: 0.10.0
libtpu: 0.0.40
codegen_flags: <defaults>
</compile_context>

<pallas_src>
import functools

import jax
import jax.numpy as jnp
from jax import lax
from jax.experimental import pallas as pl
from jax.experimental.pallas import tpu as pltpu

HIDDEN = 30      # real hidden width of fc1
LANE = 128       # TPU lane width


def _round_up(n, m):
    return ((n + m - 1) // m) * m


def actor_kernel(x_ref, w1t_ref, wht_ref, out_ref, *, a_dim):
    """One batch tile, feature-major (batch on the lane axis).

    x_ref   : [S_PAD, TILE_B]   rows [0,s_dim) = x^T, row s_dim = 1.0 (bias
                                lane), remaining rows 0.
    w1t_ref : [H_PAD, S_PAD]    fc1 weight^T; lane s_dim holds b1; row HIDDEN
                                regenerates the constant-1 row so the head
                                biases can ride the second matmul.
    wht_ref : [OUT_ROWS, H_PAD] rows [0,a_dim)=miu head, [a_dim,2a)=rou head;
                                lane HIDDEN holds the head biases.
    out_ref : [OUT_ROWS, TILE_B] packed output: rows [0,a_dim)=miu,
                                [a_dim,2a)=rou.
    Zero padding everywhere guarantees padded rows/lanes contribute nothing.
    """
    # fc1 (+ folded bias) + ReLU    -> [H_PAD, TILE_B]; row HIDDEN == 1.0
    h = jnp.dot(w1t_ref[...], x_ref[...], preferred_element_type=jnp.float32)
    h = jnp.maximum(h, 0.0)

    # Both heads (+ folded biases) in a single MXU pass -> [OUT_ROWS, TILE_B]
    y = jnp.dot(wht_ref[...], h, preferred_element_type=jnp.float32)

    # ReLU + 1e-8 only on the miu rows; rou rows stay linear. y is tiny
    # (8 sublanes), so this select is a handful of vregs per step.
    row = lax.broadcasted_iota(jnp.int32, y.shape, 0)
    y = jnp.where(row < a_dim, jnp.maximum(y, 0.0) + 1e-8, y)

    out_ref[...] = y.astype(out_ref.dtype)      # lane-dense (TILE_B % 128 == 0)


def pack_params(p, s_dim, a_dim, hidden=HIDDEN):
    """Pack weights into the exact transposed tiles the kernel consumes."""
    s_pad = _round_up(s_dim + 1, 8)          # +1 bias lane
    h_pad = _round_up(hidden + 1, 8)         # +1 constant-1 hidden row
    out_rows = _round_up(2 * a_dim, 8)

    w1t = jnp.zeros((h_pad, s_pad), jnp.float32)
    w1t = w1t.at[:hidden, :s_dim].set(p["w1"].T)       # fc1 weight^T
    w1t = w1t.at[:hidden, s_dim].set(p["b1"][0])       # fc1 bias column
    w1t = w1t.at[hidden, s_dim].set(1.0)                # h[HIDDEN] = relu(1) = 1

    wht = jnp.zeros((out_rows, h_pad), jnp.float32)
    wht = wht.at[:a_dim, :hidden].set(p["wm"].T)        # miu head
    wht = wht.at[a_dim:2 * a_dim, :hidden].set(p["wr"].T)   # rou head
    wht = wht.at[:a_dim, hidden].set(p["bm"][0])        # head biases ride lane HIDDEN
    wht = wht.at[a_dim:2 * a_dim, hidden].set(p["br"][0])
    return {"w1t": w1t, "wht": wht}


def actor_net_forward(x, packed, a_dim, *, tile_b=None):
    """x: [B, s_dim] float32. packed: output of pack_params. Returns (miu, rou)."""
    B, s_dim = x.shape
    w1t, wht = packed["w1t"], packed["wht"]
    h_pad, s_pad = w1t.shape
    out_rows = wht.shape[0]
    assert wht.shape[1] == h_pad and s_dim + 1 <= s_pad and 2 * a_dim <= out_rows

    # Batch padding / tile choice. b_pad is a multiple of 256 so we can always
    # split into >= 2 lane-aligned tiles (keeps both v7x TensorCores busy).
    b_pad = _round_up(max(B, 2 * LANE), 2 * LANE)
    if tile_b is None:
        tile_b = 4096                       # big tile: amortize per-step overhead
    tile_b = max(LANE, _round_up(tile_b, LANE))
    tile_b = min(tile_b, b_pad // 2)        # guarantee >= 2 grid steps
    b_pad = _round_up(b_pad, tile_b)

    # Feature-major input with a constant-1 bias lane (single small XLA
    # transpose+pad; no [B, 128]-wide zero-pad pass).
    x_t = jnp.zeros((s_pad, b_pad), jnp.float32)
    x_t = x_t.at[:s_dim, :B].set(x.T)
    x_t = x_t.at[s_dim, :B].set(1.0)

    out = pl.pallas_call(
        functools.partial(actor_kernel, a_dim=a_dim),
        out_shape=jax.ShapeDtypeStruct((out_rows, b_pad), jnp.float32),
        grid=(b_pad // tile_b,),
        in_specs=[
            pl.BlockSpec((s_pad, tile_b), lambda i: (0, i)),
            pl.BlockSpec((h_pad, s_pad), lambda i: (0, 0)),      # fetched once
            pl.BlockSpec((out_rows, h_pad), lambda i: (0, 0)),   # fetched once
        ],
        out_specs=pl.BlockSpec((out_rows, tile_b), lambda i: (0, i)),
        compiler_params=pltpu.CompilerParams(
            dimension_semantics=("parallel",)),
    )(x_t, w1t, wht)

    miu = out[:a_dim, :B].T           # contiguous row slices of the packed slab
    rou = out[a_dim:2 * a_dim, :B].T
    return miu, rou


def actor_net_reference(x, p):
    """Pure-JAX reference (also the small-batch fast path)."""
    h = jnp.maximum(x @ p["w1"] + p["b1"], 0.0)
    miu = jnp.maximum(h @ p["wm"] + p["bm"], 0.0) + 1e-8
    rou = h @ p["wr"] + p["br"]
    return miu, rou


def actor_net(x, params, packed, a_dim, *, small_batch_threshold=1024, tile_b=None):
    """Dispatcher: tiny production batches (B~2, ~500 FLOPs) go straight to XLA;
    rollout-scale batches use the fused Pallas kernel."""
    if x.shape[0] < small_batch_threshold:
        return actor_net_reference(x, params)
    return actor_net_forward(x, packed, a_dim, tile_b=tile_b)


def init_params(key, s_dim, a_dim, hidden=HIDDEN):
    """Matches the module's __init__: weights ~ N(0, 0.1); biases keep PyTorch
    Linear's default U(-1/sqrt(fan_in), +1/sqrt(fan_in)). Weights stored
    pre-transposed as [in, out] so y = x @ W + b."""
    k1, k2, k3, k4, k5, k6 = jax.random.split(key, 6)
    w1 = 0.1 * jax.random.normal(k1, (s_dim, hidden), jnp.float32)
    wm = 0.1 * jax.random.normal(k2, (hidden, a_dim), jnp.float32)
    wr = 0.1 * jax.random.normal(k3, (hidden, a_dim), jnp.float32)
    b1 = jax.random.uniform(k4, (1, hidden), jnp.float32,
                            -1.0 / jnp.sqrt(s_dim), 1.0 / jnp.sqrt(s_dim))
    bm = jax.random.uniform(k5, (1, a_dim), jnp.float32,
                            -1.0 / jnp.sqrt(hidden), 1.0 / jnp.sqrt(hidden))
    br = jax.random.uniform(k6, (1, a_dim), jnp.float32,
                            -1.0 / jnp.sqrt(hidden), 1.0 / jnp.sqrt(hidden))
    return {"w1": w1, "b1": b1, "wm": wm, "bm": bm, "wr": wr, "br": br}


if __name__ == "__main__":
    s_dim, a_dim, batch = 4, 2, 2
    key = jax.random.PRNGKey(0)
    k_param, k_x = jax.random.split(key)
    params = init_params(k_param, s_dim, a_dim)
    packed = pack_params(params, s_dim, a_dim)

    # Small-batch sanity (force the Pallas kernel path even though the
    # dispatcher would prefer XLA at B=2).
    x = jax.random.normal(k_x, (batch, s_dim), jnp.float32)
    miu, rou = actor_net_forward(x, packed, a_dim)
    jax.block_until_ready((miu, rou))
    miu_ref, rou_ref = actor_net_reference(x, params)
    assert miu.shape == (batch, a_dim) and rou.shape == (batch, a_dim)
    assert jnp.allclose(miu, miu_ref, atol=2e-5, rtol=2e-5)
    assert jnp.allclose(rou, rou_ref, atol=2e-5, rtol=2e-5)

    # Rollout-scale batch: exercises the multi-step parallel grid (2 tiles).
    x_big = jax.random.normal(jax.random.PRNGKey(3), (4096, s_dim), jnp.float32)
    miu_b, rou_b = actor_net(x_big, params, packed, a_dim)
    jax.block_until_ready((miu_b, rou_b))
    miu_bref, rou_bref = actor_net_reference(x_big, params)
    assert jnp.allclose(miu_b, miu_bref, atol=2e-5, rtol=2e-5)
    assert jnp.allclose(rou_b, rou_bref, atol=2e-5, rtol=2e-5)

    print("KERNEL_OK")
</pallas_src>

<mosaic_0001>
module attributes {stable_mosaic.version = 11 : i64} {
  func.func @actor_kernel(%arg0: i32, %arg1: memref<8x128xf32, #tpu.memory_space<vmem>>, %arg2: memref<32x8xf32, #tpu.memory_space<vmem>>, %arg3: memref<8x32xf32, #tpu.memory_space<vmem>>, %arg4: memref<8x128xf32, #tpu.memory_space<vmem>>) attributes {dimension_semantics = [#tpu.dimension_semantics<parallel>], iteration_bounds = array<i64: 2>, scalar_prefetch = 0 : i64, scratch_operands = 0 : i64, tpu.core_type = #tpu.core_type<tc>, window_params = [{transform_indices = @transform_0, window_bounds = array<i64: 8, 128>}, {pipeline_mode = #tpu.pipeline_mode<synchronous>, transform_indices = @transform_1, window_bounds = array<i64: 32, 8>}, {pipeline_mode = #tpu.pipeline_mode<synchronous>, transform_indices = @transform_2, window_bounds = array<i64: 8, 32>}, {transform_indices = @transform_3, window_bounds = array<i64: 8, 128>}]} {
    %c0 = arith.constant 0 : index
    %c0_0 = arith.constant 0 : index
    %0 = vector.load %arg2[%c0, %c0_0] : memref<32x8xf32, #tpu.memory_space<vmem>>, vector<32x8xf32>
    %c0_1 = arith.constant 0 : index
    %c0_2 = arith.constant 0 : index
    %1 = vector.load %arg1[%c0_1, %c0_2] : memref<8x128xf32, #tpu.memory_space<vmem>>, vector<8x128xf32>
    %cst = arith.constant dense<0.000000e+00> : vector<32x128xf32>
    %2 = tpu.matmul %0, %1, %cst {dimension_numbers = #tpu.dot_dimension_numbers<[1], [0], [0], [1], [0, 0, 1, 1], [], []>} : vector<32x8xf32>, vector<8x128xf32>, vector<32x128xf32> -> vector<32x128xf32>
    %cst_3 = arith.constant 0.000000e+00 : f32
    %3 = vector.broadcast %cst_3 : f32 to vector<32x128xf32>
    %4 = arith.maximumf %2, %3 : vector<32x128xf32>
    %c0_4 = arith.constant 0 : index
    %c0_5 = arith.constant 0 : index
    %5 = vector.load %arg3[%c0_4, %c0_5] : memref<8x32xf32, #tpu.memory_space<vmem>>, vector<8x32xf32>
    %cst_6 = arith.constant dense<0.000000e+00> : vector<8x128xf32>
    %6 = tpu.matmul %5, %4, %cst_6 {dimension_numbers = #tpu.dot_dimension_numbers<[1], [0], [0], [1], [0, 0, 1, 1], [], []>} : vector<8x32xf32>, vector<32x128xf32>, vector<8x128xf32> -> vector<8x128xf32>
    %7 = tpu.iota {dimensions = array<i32: 0>} : vector<8x128xi32>
    %c2_i32 = arith.constant 2 : i32
    %8 = vector.broadcast %c2_i32 : i32 to vector<8x128xi32>
    %9 = arith.cmpi slt, %7, %8 : vector<8x128xi32>
    %cst_7 = arith.constant 0.000000e+00 : f32
    %10 = vector.broadcast %cst_7 : f32 to vector<8x128xf32>
    %11 = arith.maximumf %6, %10 : vector<8x128xf32>
    %cst_8 = arith.constant 9.99999993E-9 : f32
    %12 = vector.broadcast %cst_8 : f32 to vector<8x128xf32>
    %13 = arith.addf %11, %12 : vector<8x128xf32>
    %14 = arith.select %9, %13, %6 : vector<8x128xi1>, vector<8x128xf32>
    %c0_9 = arith.constant 0 : index
    %c0_10 = arith.constant 0 : index
    %15 = vector.load %arg4[%c0_9, %c0_10] : memref<8x128xf32, #tpu.memory_space<vmem>>, vector<8x128xf32>
    tpu.vector_store %arg4[%c0_9, %c0_10], %14 {strides = array<i32>} : memref<8x128xf32, #tpu.memory_space<vmem>>, vector<8x128xf32>,
    return
  }
  func.func @transform_0(%arg0: i32) -> (i32, i32) {
    %c0_i32 = arith.constant 0 : i32
    %c0_i32_0 = arith.constant 0 : i32
    return %c0_i32, %arg0 : i32, i32
  }
  func.func @transform_1(%arg0: i32) -> (i32, i32) {
    %c0_i32 = arith.constant 0 : i32
    %c0_i32_0 = arith.constant 0 : i32
    %c0_i32_1 = arith.constant 0 : i32
    return %c0_i32, %c0_i32_0 : i32, i32
  }
  func.func @transform_2(%arg0: i32) -> (i32, i32) {
    %c0_i32 = arith.constant 0 : i32
    %c0_i32_0 = arith.constant 0 : i32
    %c0_i32_1 = arith.constant 0 : i32
    return %c0_i32, %c0_i32_0 : i32, i32
  }
  func.func @transform_3(%arg0: i32) -> (i32, i32) {
    %c0_i32 = arith.constant 0 : i32
    %c0_i32_0 = arith.constant 0 : i32
    return %c0_i32, %arg0 : i32, i32
  }
}

</mosaic_0001>

<llo_original>
// kernel: tpu_custom_call.1
$region0: #{tpu_custom_call.1}
  #allocation0 [shape = 'u32[]', space=smem, size = 0x4, offset = 0x4, fixed_abs, tag = 'smem constant byte address 0x4 - core index']
  #allocation1 [shape = 'u32[144,128]{1,0:T(1,128)}', space=vmem, size = 0x12000, scoped, tag = 'internal scratch']
  %s0 = inlined_call_operand.vmem [shape: f32[8,256], index: 0, kind: input, shape index: {}]
  %s1 = inlined_call_operand.vmem [shape: f32[32,8], index: 1, kind: input, shape index: {}]
  %s2 = inlined_call_operand.vmem [shape: f32[8,32], index: 2, kind: input, shape index: {}]
  %s3 = inlined_call_operand.hbm [shape: f32[8,256], index: 3, kind: output, shape index: {}]
  %s4 = sld [smem:[#allocation0]]
  $region45: #{tpu_custom_call.1} parent=0
    _
  %s6 = ssub.s32 1, %s4
  %s7 = scalar_select 0, %s6, %s4
  $region1: #{tpu_custom_call.1} parent=0
    #allocation2 [shape = 'u8[8192]{0}', space=vmem, size = 0x2000, scoped, tag = 'output window, operand 0']
    #allocation3 [shape = 's32[2]{0}', space=sflag, size = 0x8, scoped, tag = 'scoped memory for tpu_custom_call.1']
    %8 = vsyncpa [#allocation3], 0
    %s9 = scalar_lea.sflag [#allocation3], 1
    %10 = vsyncpa %s9, 0
    loop: start=0, step=1, limit=4
    $region2: #{tpu_custom_call.1} parent=1 // loop_pre_header
      _
    $region3: #{tpu_custom_call.1} parent=1 // loop_header
      %s12 = sphi 0, %s16
      %p13 = scmp.ge.s32.totalorder %s12, 4
      %s22 = sphi 0, %s24
      %s25 = sphi 0, %s22
      %s26 = sphi 0, %s25
      %s42 = sphi 0, %s26
      %s46 = sphi 0, %s46
      %s48 = sphi 0, %s46
      %s49 = sphi 0, %s48
      %s63 = sphi 0, %s49
      %s67 = sphi 0, %s67
      %s69 = sphi 0, %s67
      %s70 = sphi 0, %s69
      %s84 = sphi 0, %s70
      %s90 = sphi 0, %s92
      %s93 = sphi 0, %s90
      %s94 = sphi 0, %s93
      %s110 = sphi 0, %s94
    $region4: #{tpu_custom_call.1} parent=1 // loop_header_branch
      %15 = sbr.rel (%p13) target = $region8
    $region5: #{tpu_custom_call.1} parent=1 // loop_body
      %s17 = ssub.s32 %s12, 1
      %s18 = ssub.s32 %s12, 2
      %s19 = sadd.s32 %s12, 1
      %s20 = ssub.s32 %s12, %s19
      %p21 = scmp.eq.s32.totalorder %s20, 0
      %s23 = sadd.s32 %s22, 1
      %s24 = scalar_select %p21, %s22, %s23
      %p27 = pneg %p21
      %p28 = scmp.eq.s32.totalorder %s12, 1
      %p29 = por %p27, %p28
      %p30 = scmp.ne.s32.totalorder %s22, %s25
      %p31 = scmp.eq.s32.totalorder %s12, 0
      %p32 = por %p30, %p31
      %p33 = scmp.ne.s32.totalorder %s22, %s25
      %p34 = scmp.eq.s32.totalorder %s17, 1
      %p35 = por %p33, %p34
      %p36 = scmp.ne.s32.totalorder %s25, %s26
      %p37 = scmp.eq.s32.totalorder %s17, 0
      %p38 = por %p36, %p37
      %p39 = scmp.ne.s32.totalorder %s25, %s26
      %p40 = scmp.eq.s32.totalorder %s18, 1
      %p41 = por %p39, %p40
      %p43 = scmp.ne.s32.totalorder %s26, %s42
      %p44 = scmp.eq.s32.totalorder %s18, 0
      %p45 = por %p43, %p44
      %s47 = sadd.s32 %s46, 1
      %p50 = scmp.eq.s32.totalorder %s12, 1
      %p51 = scmp.ne.s32.totalorder %s46, %s48
      %p52 = scmp.eq.s32.totalorder %s12, 0
      %p53 = por %p51, %p52
      %p54 = scmp.ne.s32.totalorder %s46, %s48
      %p55 = scmp.eq.s32.totalorder %s17, 1
      %p56 = por %p54, %p55
      %p57 = scmp.ne.s32.totalorder %s48, %s49
      %p58 = scmp.eq.s32.totalorder %s17, 0
      %p59 = por %p57, %p58
      %p60 = scmp.ne.s32.totalorder %s48, %s49
      %p61 = scmp.eq.s32.totalorder %s18, 1
      %p62 = por %p60, %p61
      %p64 = scmp.ne.s32.totalorder %s49, %s63
      %p65 = scmp.eq.s32.totalorder %s18, 0
      %p66 = por %p64, %p65
      %s68 = sadd.s32 %s67, 1
      %p71 = scmp.eq.s32.totalorder %s12, 1
      %p72 = scmp.ne.s32.totalorder %s67, %s69
      %p73 = scmp.eq.s32.totalorder %s12, 0
      %p74 = por %p72, %p73
      %p75 = scmp.ne.s32.totalorder %s67, %s69
      %p76 = scmp.eq.s32.totalorder %s17, 1
      %p77 = por %p75, %p76
      %p78 = scmp.ne.s32.totalorder %s69, %s70
      %p79 = scmp.eq.s32.totalorder %s17, 0
      %p80 = por %p78, %p79
      %p81 = scmp.ne.s32.totalorder %s69, %s70
      %p82 = scmp.eq.s32.totalorder %s18, 1
      %p83 = por %p81, %p82
      %p85 = scmp.ne.s32.totalorder %s70, %s84
      %p86 = scmp.eq.s32.totalorder %s18, 0
      %p87 = por %p85, %p86
      %s88 = ssub.s32 %s12, %s19
      %p89 = scmp.eq.s32.totalorder %s88, 0
      %s91 = sadd.s32 %s90, 1
      %s92 = scalar_select %p89, %s90, %s91
      %p95 = pneg %p89
      %p96 = scmp.eq.s32.totalorder %s12, 1
      %p97 = por %p95, %p96
      %p98 = scmp.ne.s32.totalorder %s90, %s93
      %p99 = scmp.eq.s32.totalorder %s12, 0
      %p100 = por %p98, %p99
      %p101 = scmp.ne.s32.totalorder %s90, %s93
      %p102 = scmp.eq.s32.totalorder %s17, 1
      %p103 = por %p101, %p102
      %p104 = scmp.ne.s32.totalorder %s93, %s94
      %p105 = scmp.eq.s32.totalorder %s17, 0
      %p106 = por %p104, %p105
      %p107 = scmp.ne.s32.totalorder %s93, %s94
      %p108 = scmp.eq.s32.totalorder %s18, 1
      %p109 = por %p107, %p108
      %p111 = scmp.ne.s32.totalorder %s94, %s110
      %p112 = scmp.eq.s32.totalorder %s18, 0
      %p113 = por %p111, %p112
      %p114 = scmp.le.s32.totalorder 1, %s12
      %p115 = scmp.lt.s32.totalorder %s12, 3
      %p116 = pnand %p114, %p115
      %p117 = pneg %p116
      // Predicated region
      $region9: #{tpu_custom_call.1} parent=5 // pred_check
        _
      $region10: #{tpu_custom_call.1} parent=5 // pred_check_branch
        %119 = sbr.rel (%p116) target = $region12
      $region11: #{tpu_custom_call.1} parent=5 // pred_region
        %s120 = ssub.s32 %s12, 1
        // Predicated region
        $region13: #{tpu_custom_call.1} parent=11 // pred_check
          %p121 = pneg %p59
        $region14: #{tpu_custom_call.1} parent=11 // pred_check_branch
          %123 = sbr.rel (%p121) target = $region16
        $region15: #{tpu_custom_call.1} parent=11 // pred_region
          _
        $region16: #{tpu_custom_call.1} parent=11 // pred_fallthru
          _
        // Predicated region
        $region17: #{tpu_custom_call.1} parent=11 // pred_check
          %p124 = pneg %p80
        $region18: #{tpu_custom_call.1} parent=11 // pred_check_branch
          %126 = sbr.rel (%p124) target = $region20
        $region19: #{tpu_custom_call.1} parent=11 // pred_region
          _
        $region20: #{tpu_custom_call.1} parent=11 // pred_fallthru
          _
      $region12: #{tpu_custom_call.1} parent=5 // pred_fallthru
        _
      %p127 = scmp.lt.s32.totalorder %s12, 2
      // Predicated region
      $region21: #{tpu_custom_call.1} parent=5 // pred_check
        %p128 = pneg %p127
      $region22: #{tpu_custom_call.1} parent=5 // pred_check_branch
        %130 = sbr.rel (%p128) target = $region24
      $region23: #{tpu_custom_call.1} parent=5 // pred_region
        // Predicated region
        $region25: #{tpu_custom_call.1} parent=23 // pred_check
          %p131 = pneg %p32
        $region26: #{tpu_custom_call.1} parent=23 // pred_check_branch
          %133 = sbr.rel (%p131) target = $region28
        $region27: #{tpu_custom_call.1} parent=23 // pred_region
          %p134 = scmp.lt.s32.totalorder %s12, 1
          %s135 = scalar_select %p134, %s12, 1
          %s136 = smul.addr %s135, 8
          %s137 = scalar_lea.vmem %s0, %s136
        $region28: #{tpu_custom_call.1} parent=23 // pred_fallthru
          _
      $region24: #{tpu_custom_call.1} parent=5 // pred_fallthru
        _
      %p138 = scmp.le.s32.totalorder 1, %s12
      %p139 = scmp.lt.s32.totalorder %s12, 3
      %p140 = pnand %p138, %p139
      %p141 = pneg %p140
      // Predicated region
      $region29: #{tpu_custom_call.1} parent=5 // pred_check
        _
      $region30: #{tpu_custom_call.1} parent=5 // pred_check_branch
        %143 = sbr.rel (%p140) target = $region32
      $region31: #{tpu_custom_call.1} parent=5 // pred_region
        %s144 = ssub.s32 %s12, 1
        %p145 = scmp.lt.s32.totalorder %s17, 1
        %s146 = scalar_select %p145, %s17, 1
        %s147 = smul.addr %s146, 8
        %s148 = scalar_lea.vmem %s0, %s147
        %p149 = pneg %p38
        %p150 = pneg %p35
        %p151 = pneg %p59
        %p152 = pneg %p56
        %p153 = pneg %p80
        %p154 = pneg %p77
        %p155 = pneg %p106
        %p156 = pneg %p103
        %s157 = sand.u32 %s93, 1
        %s158 = scalar_lea.sflag [#allocation3], %s157
        %s159 = sand.u32 %s93, 1
        %s160 = smul.addr %s159, 8
        %s161 = scalar_lea.vmem [#allocation2], %s160
        %p162 = scmp.lt.s32.totalorder %s17, 1
        %s163 = scalar_select %p162, %s17, 1
        %s164 = smul.addr %s163, 8
        %s165 = scalar_lea.vmem %s0, %s164
        %v166 = vld [vmem:[%s1] sm:$0xff]
        %v167 = vld [vmem:[%s1 + $0x8] sm:$0xff]
        %v168 = vld [vmem:[%s1 + $0x10] sm:$0xff]
        %v169 = vld [vmem:[%s1 + $0x18] sm:$0xff]
        %v170 = vld [vmem:[%s165] sm:$0xff]
        %vm171 = vcmask 64512
        %v173 = vsel %vm171, %v166, 0
        %v176 = vsel %vm171, %v167, 0
        %v179 = vsel %vm171, %v168, 0
        %v182 = vsel %vm171, %v169, 0
        %184 = vmatprep.subr.mxu0 0.0
        %185 = vmatpush1.msra.mxu0 %v170
        %186 = vmatprep.subr.mxu0 0.0
        %187 = vmatpush1.msra.mxu0 0.0
        %188 = vmatprep.subr.mxu0 0.0
        %189 = vmatpush1.msra.mxu0 0.0
        %190 = vmatprep.subr.mxu0 0.0
        %191 = vmatpush1.msra.mxu0 0.0
        %192 = vmatprep.subr.mxu0 0.0
        %193 = vmatpush1.msra.mxu0 0.0
        %194 = vmatprep.subr.mxu0 0.0
        %195 = vmatpush1.msra.mxu0 0.0
        %196 = vmatprep.subr.mxu0 0.0
        %197 = vmatpush1.msra.mxu0 0.0
        %198 = vmatprep.subr.mxu0 0.0
        %199 = vmatpush1.msra.mxu0 0.0
        %200 = vmatprep.subr.mxu0 0.0
        %201 = vmatpush1.msra.mxu0 0.0
        %202 = vmatprep.subr.mxu0 0.0
        %203 = vmatpush1.msra.mxu0 0.0
        %204 = vmatprep.subr.mxu0 0.0
        %205 = vmatpush1.msra.mxu0 0.0
        %206 = vmatprep.subr.mxu0 0.0
        %207 = vmatpush1.msra.mxu0 0.0
        %208 = vmatprep.subr.mxu0 0.0
        %209 = vmatpush1.msra.mxu0 0.0
        %210 = vmatprep.subr.mxu0 0.0
        %211 = vmatpush1.msra.mxu0 0.0
        %212 = vmatprep.subr.mxu0 0.0
        %213 = vmatpush1.msra.mxu0 0.0
        %214 = vmatprep.subr.mxu0 0.0
        %215 = vmatpush1.msra.mxu0 0.0
        %216 = vmatprep.subr.mxu0 0.0
        %217 = vmatpush1.msra.mxu0 0.0
        %218 = vmatprep.subr.mxu0 0.0
        %219 = vmatpush1.msra.mxu0 0.0
        %220 = vmatprep.subr.mxu0 0.0
        %221 = vmatpush1.msra.mxu0 0.0
        %222 = vmatprep.subr.mxu0 0.0
        %223 = vmatpush1.msra.mxu0 0.0
        %224 = vmatprep.subr.mxu0 0.0
        %225 = vmatpush1.msra.mxu0 0.0
        %226 = vmatprep.subr.mxu0 0.0
        %227 = vmatpush1.msra.mxu0 0.0
        %228 = vmatprep.subr.mxu0 0.0
        %229 = vmatpush1.msra.mxu0 0.0
        %230 = vmatprep.subr.mxu0 0.0
        %231 = vmatpush1.msra.mxu0 0.0
        %232 = vmatprep.subr.mxu0 0.0
        %233 = vmatpush1.msra.mxu0 0.0
        %234 = vmatprep.subr.mxu0 0.0
        %235 = vmatpush1.msra.mxu0 0.0
        %236 = vmatprep.subr.mxu0 0.0
        %237 = vmatpush1.msra.mxu0 0.0
        %238 = vmatprep.subr.mxu0 0.0
        %239 = vmatpush1.msra.mxu0 0.0
        %240 = vmatprep.subr.mxu0 0.0
        %241 = vmatpush1.msra.mxu0 0.0
        %242 = vmatprep.subr.mxu0 0.0
        %243 = vmatpush1.msra.mxu0 0.0
        %244 = vmatprep.subr.mxu0 0.0
        %245 = vmatpush1.msra.mxu0 0.0
        %246 = vmatprep.subr.mxu0 0.0
        %247 = vmatpush1.msra.mxu0 0.0
        %248 = vmatprep.mubr.f32.mxu0 0.0
        %249 = vmatmul.mubr.f32.gmra.mrb[0].mxu0 %v173
        %v250 = vpop.f32.mrb[0].mxu0
        %v251 = vadd.f32 0.0, %v250
        %v252 = vpop.f32.mrb[0].mxu0
        %253 = vmatprep.mubr.f32.mxu0 0.0
        %254 = vmatmul.mubr.f32.gmra.mrb[0].mxu0 %v176
        %v255 = vpop.f32.mrb[0].mxu0
        %v256 = vadd.f32 0.0, %v255
        %v257 = vpop.f32.mrb[0].mxu0
        %258 = vmatprep.mubr.f32.mxu0 0.0
        %259 = vmatmul.mubr.f32.gmra.mrb[0].mxu0 %v179
        %v260 = vpop.f32.mrb[0].mxu0
        %v261 = vadd.f32 0.0, %v260
        %v262 = vpop.f32.mrb[0].mxu0
        %263 = vmatprep.mubr.f32.mxu0 0.0
        %264 = vmatmul.mubr.f32.gmra.mrb[0].mxu0 %v182
        %v265 = vpop.f32.mrb[0].mxu0
        %v266 = vadd.f32 0.0, %v265
        %v267 = vpop.f32.mrb[0].mxu0
        %268 = vdwg.mxu0
        %v269 = vmax.f32 %v251, 0.0
        %v270 = vmax.f32 %v256, 0.0
        %v271 = vmax.f32 %v261, 0.0
        %v272 = vmax.f32 %v266, 0.0
        %v273 = vld [vmem:[%s2] sm:$0xff]
        %vm274 = vcmask 261120
        %v276 = vsel %vm274, %v273, 0
        %278 = vmatprep.subr.mxu0 0.0
        %279 = vmatpush1.msra.mxu0 %v269
        %280 = vmatprep.subr.mxu0 0.0
        %281 = vmatpush1.msra.mxu0 %v270
        %282 = vmatprep.subr.mxu0 0.0
        %283 = vmatpush1.msra.mxu0 %v271
        %284 = vmatprep.subr.mxu0 0.0
        %285 = vmatpush1.msra.mxu0 %v272
        %286 = vmatprep.subr.mxu0 0.0
        %287 = vmatpush1.msra.mxu0 0.0
        %288 = vmatprep.subr.mxu0 0.0
        %289 = vmatpush1.msra.mxu0 0.0
        %290 = vmatprep.subr.mxu0 0.0
        %291 = vmatpush1.msra.mxu0 0.0
        %292 = vmatprep.subr.mxu0 0.0
        %293 = vmatpush1.msra.mxu0 0.0
        %294 = vmatprep.subr.mxu0 0.0
        %295 = vmatpush1.msra.mxu0 0.0
        %296 = vmatprep.subr.mxu0 0.0
        %297 = vmatpush1.msra.mxu0 0.0
        %298 = vmatprep.subr.mxu0 0.0
        %299 = vmatpush1.msra.mxu0 0.0
        %300 = vmatprep.subr.mxu0 0.0
        %301 = vmatpush1.msra.mxu0 0.0
        %302 = vmatprep.subr.mxu0 0.0
        %303 = vmatpush1.msra.mxu0 0.0
        %304 = vmatprep.subr.mxu0 0.0
        %305 = vmatpush1.msra.mxu0 0.0
        %306 = vmatprep.subr.mxu0 0.0
        %307 = vmatpush1.msra.mxu0 0.0
        %308 = vmatprep.subr.mxu0 0.0
        %309 = vmatpush1.msra.mxu0 0.0
        %310 = vmatprep.subr.mxu0 0.0
        %311 = vmatpush1.msra.mxu0 0.0
        %312 = vmatprep.subr.mxu0 0.0
        %313 = vmatpush1.msra.mxu0 0.0
        %314 = vmatprep.subr.mxu0 0.0
        %315 = vmatpush1.msra.mxu0 0.0
        %316 = vmatprep.subr.mxu0 0.0
        %317 = vmatpush1.msra.mxu0 0.0
        %318 = vmatprep.subr.mxu0 0.0
        %319 = vmatpush1.msra.mxu0 0.0
        %320 = vmatprep.subr.mxu0 0.0
        %321 = vmatpush1.msra.mxu0 0.0
        %322 = vmatprep.subr.mxu0 0.0
        %323 = vmatpush1.msra.mxu0 0.0
        %324 = vmatprep.subr.mxu0 0.0
        %325 = vmatpush1.msra.mxu0 0.0
        %326 = vmatprep.subr.mxu0 0.0
        %327 = vmatpush1.msra.mxu0 0.0
        %328 = vmatprep.subr.mxu0 0.0
        %329 = vmatpush1.msra.mxu0 0.0
        %330 = vmatprep.subr.mxu0 0.0
        %331 = vmatpush1.msra.mxu0 0.0
        %332 = vmatprep.subr.mxu0 0.0
        %333 = vmatpush1.msra.mxu0 0.0
        %334 = vmatprep.subr.mxu0 0.0
        %335 = vmatpush1.msra.mxu0 0.0
        %336 = vmatprep.subr.mxu0 0.0
        %337 = vmatpush1.msra.mxu0 0.0
        %338 = vmatprep.subr.mxu0 0.0
        %339 = vmatpush1.msra.mxu0 0.0
        %340 = vmatprep.subr.mxu0 0.0
        %341 = vmatpush1.msra.mxu0 0.0
        %342 = vmatprep.mubr.f32.mxu0 0.0
        %343 = vmatmul.mubr.f32.gmra.mrb[0].mxu0 %v276
        %v344 = vpop.f32.mrb[0].mxu0
        %v345 = vadd.f32 0.0, %v344
        %v346 = vpop.f32.mrb[0].mxu0
        %347 = vdwg.mxu0
        %v348 = vlaneseq
        %v349 = vshrl.u32 %v348, 7
        %vm350 = vcmp.lt.s32.totalorder %v349, 2
        %v351 = vmax.f32 %v345, 0.0
        %v352 = vadd.f32 %v351, 1e-08
        %v353 = vsel %vm350, %v352, %v345
        %354 = vst [vmem:[%s161] sm:$0xff] %v353
        %s355 = sand.u32 %s93, 1
        %s356 = scalar_lea.sflag [#allocation3], %s355
        %s357 = sand.u32 %s93, 1
        %s358 = smul.addr %s357, 8
        %s359 = scalar_lea.vmem [#allocation2], %s358
        // Predicated region
        $region33: #{tpu_custom_call.1} parent=31 // pred_check
          %p360 = pneg %p103
        $region34: #{tpu_custom_call.1} parent=31 // pred_check_branch
          %362 = sbr.rel (%p360) target = $region36
        $region35: #{tpu_custom_call.1} parent=31 // pred_region
          %s364 = ssub.s32 128, 128
          %365 = vsyncadd %s356, %s364
          %s366 = smul.addr %s17, 128
          %s367 = scalar_lea.hbm %s3, %s366
          %s369 = sshll.u32 %s359, 4
          %s370 = int_to_ptr.vmem [resolvable:$true] %s369
          %372 = dma.vmem_to_hbm [thread:$0]  %s370, 128, %s367, %s356
        $region36: #{tpu_custom_call.1} parent=31 // pred_fallthru
          _
      $region32: #{tpu_custom_call.1} parent=5 // pred_fallthru
        _
      %p373 = scmp.le.s32.totalorder 2, %s12
      // Predicated region
      $region37: #{tpu_custom_call.1} parent=5 // pred_check
        %p374 = pneg %p373
      $region38: #{tpu_custom_call.1} parent=5 // pred_check_branch
        %376 = sbr.rel (%p374) target = $region40
      $region39: #{tpu_custom_call.1} parent=5 // pred_region
        %s377 = ssub.s32 %s12, 2
        // Predicated region
        $region41: #{tpu_custom_call.1} parent=39 // pred_check
          %p378 = pneg %p109
        $region42: #{tpu_custom_call.1} parent=39 // pred_check_branch
          %380 = sbr.rel (%p378) target = $region44
        $region43: #{tpu_custom_call.1} parent=39 // pred_region
          %s381 = sand.u32 %s94, 1
          %s382 = scalar_lea.sflag [#allocation3], %s381
          %s383 = sand.u32 %s94, 1
          %s384 = smul.addr %s383, 8
          %s385 = scalar_lea.vmem [#allocation2], %s384
          %386 = dma.done %s382, 128
        $region44: #{tpu_custom_call.1} parent=39 // pred_fallthru
          _
      $region40: #{tpu_custom_call.1} parent=5 // pred_fallthru
        _
    $region6: #{tpu_custom_call.1} parent=1 // loop_footer
      %s16 = sadd.s32 1, %s12
    $region7: #{tpu_custom_call.1} parent=1 // loop_footer_branch
      %11 = sbr.rel target = $region3
    $region8: #{tpu_custom_call.1} parent=1 // loop_exit
      _
    %387 = vsyncpa [#allocation3], 1
    %s388 = scalar_lea.sflag [#allocation3], 1
    %389 = vsyncpa %s388, 1

</llo_original>
